<compile_context>
chip_gen: v7x
topology: tpu7x:2x2x1
jax: 0.10.0
libtpu: 0.0.40
codegen_flags: <defaults>
</compile_context>

<pallas_src>
import jax
import jax.numpy as jnp
from jax.experimental import pallas as pl
from jax.experimental.pallas import tpu as pltpu


def se_layer_kernel(x_ref, w1t_ref, w2_ref, o_ref):
    # x_ref  : (C, H*W)  -- channels on sublanes, flattened spatial on lanes
    # w1t_ref: (C, hid)  -- fc1.weight.T (Linear C -> C//r, no bias)
    # w2_ref : (C, hid)  -- fc2.weight   (Linear C//r -> C, no bias)
    x = x_ref[...]

    # Global average pool over spatial (lane-axis reduction, XLU).
    pooled = jnp.mean(x, axis=1, keepdims=True)                         # (C, 1)

    # fc1 + ReLU on the VPU: broadcast-multiply then sublane reduction.
    h = jnp.maximum(
        jnp.sum(w1t_ref[...] * pooled, axis=0, keepdims=True), 0.0)     # (1, hid)

    # fc2 + sigmoid: broadcast-multiply then lane reduction; sigmoid -> EUP.
    gate = jax.nn.sigmoid(
        jnp.sum(w2_ref[...] * h, axis=1, keepdims=True))                # (C, 1)

    # Channel-wise rescale, lane-dense store.
    o_ref[...] = x * gate


def se_layer(x_nchw, fc1_w, fc2_w):
    """x_nchw: (B, C, H, W); fc1_w: (C//r, C); fc2_w: (C, C//r)."""
    B, C, H, W = x_nchw.shape
    hid = fc1_w.shape[0]
    HW = H * W

    # Contiguous reshape only -- no transpose / pad / extra HBM round trips.
    x2 = x_nchw.reshape(B, C, HW)
    w1t = fc1_w.T  # (C, hid)

    # TODO(synk): for very large H*W (does not fit a single VMEM block, e.g. on
    # v7x's 64 MiB VMEM) this would need a two-pass / accumulator grid over
    # spatial tiles because the global pool needs the whole image.
    out = pl.pallas_call(
        se_layer_kernel,
        out_shape=jax.ShapeDtypeStruct((B, C, HW), x_nchw.dtype),
        grid=(B,),
        in_specs=[
            pl.BlockSpec((None, C, HW), lambda b: (b, 0, 0)),   # x, per-batch block
            pl.BlockSpec((C, hid), lambda b: (0, 0)),           # fc1^T (resident)
            pl.BlockSpec((C, hid), lambda b: (0, 0)),           # fc2   (resident)
        ],
        out_specs=pl.BlockSpec((None, C, HW), lambda b: (b, 0, 0)),
        compiler_params=pltpu.CompilerParams(
            dimension_semantics=("parallel",)),                 # 2 TCs on v7x
    )(x2, w1t, fc2_w)

    return out.reshape(B, C, H, W)


def reference_forward(x, fc1_w, fc2_w):
    # Pure-JAX reference matching the PyTorch SELayer forward.
    y = x.mean(axis=(2, 3))                        # (B, C)
    y = jnp.maximum(y @ fc1_w.T, 0.0)              # (B, C//r)
    y = jax.nn.sigmoid(y @ fc2_w.T)                # (B, C)
    return x * y[:, :, None, None]


if __name__ == "__main__":
    B, C, H, W = 2, 32, 16, 16
    reduction = 16
    hid = C // reduction                            # = 2

    key = jax.random.PRNGKey(0)
    k = jax.random.split(key, 3)
    x = jax.random.normal(k[0], (B, C, H, W), jnp.float32)
    fc1_w = jax.random.normal(k[1], (hid, C), jnp.float32) * 0.2   # Linear(C -> C/r)
    fc2_w = jax.random.normal(k[2], (C, hid), jnp.float32) * 0.2   # Linear(C/r -> C)

    out = se_layer(x, fc1_w, fc2_w)
    out = jax.block_until_ready(out)

    ref = reference_forward(x, fc1_w, fc2_w)
    assert out.shape == (B, C, H, W)
    assert jnp.allclose(out, ref, atol=1e-4, rtol=1e-4), (
        float(jnp.max(jnp.abs(out - ref))))

    print("KERNEL_OK")
</pallas_src>

<mosaic_0001>
module attributes {stable_mosaic.version = 11 : i64} {
  func.func @se_layer_kernel(%arg0: i32, %arg1: memref<1x32x256xf32, #tpu.memory_space<vmem>>, %arg2: memref<32x2xf32, #tpu.memory_space<vmem>>, %arg3: memref<32x2xf32, #tpu.memory_space<vmem>>, %arg4: memref<1x32x256xf32, #tpu.memory_space<vmem>>) attributes {dimension_semantics = [#tpu.dimension_semantics<parallel>], iteration_bounds = array<i64: 2>, scalar_prefetch = 0 : i64, scratch_operands = 0 : i64, tpu.core_type = #tpu.core_type<tc>, window_params = [{transform_indices = @transform_0, window_bounds = array<i64: 1, 32, 256>}, {pipeline_mode = #tpu.pipeline_mode<synchronous>, transform_indices = @transform_1, window_bounds = array<i64: 32, 2>}, {pipeline_mode = #tpu.pipeline_mode<synchronous>, transform_indices = @transform_2, window_bounds = array<i64: 32, 2>}, {transform_indices = @transform_3, window_bounds = array<i64: 1, 32, 256>}]} {
    %c0 = arith.constant 0 : index
    %c0_0 = arith.constant 0 : index
    %c0_1 = arith.constant 0 : index
    %0 = vector.load %arg1[%c0, %c0_0, %c0_1] : memref<1x32x256xf32, #tpu.memory_space<vmem>>, vector<1x32x256xf32>
    %1 = vector.shape_cast %0 : vector<1x32x256xf32> to vector<32x256xf32>
    %cst = arith.constant dense<0.000000e+00> : vector<32xf32>
    %2 = vector.multi_reduction <add>, %1, %cst [1] : vector<32x256xf32> to vector<32xf32>
    %3 = vector.shape_cast %2 : vector<32xf32> to vector<32x1xf32>
    %cst_2 = arith.constant 2.560000e+02 : f32
    %4 = vector.broadcast %cst_2 : f32 to vector<32x1xf32>
    %5 = arith.divf %3, %4 : vector<32x1xf32>
    %c0_3 = arith.constant 0 : index
    %c0_4 = arith.constant 0 : index
    %6 = vector.load %arg2[%c0_3, %c0_4] : memref<32x2xf32, #tpu.memory_space<vmem>>, vector<32x2xf32>
    %7 = vector.broadcast %5 : vector<32x1xf32> to vector<32x2xf32>
    %8 = arith.mulf %6, %7 : vector<32x2xf32>
    %cst_5 = arith.constant dense<0.000000e+00> : vector<2xf32>
    %9 = vector.multi_reduction <add>, %8, %cst_5 [0] : vector<32x2xf32> to vector<2xf32>
    %10 = vector.shape_cast %9 : vector<2xf32> to vector<1x2xf32>
    %cst_6 = arith.constant 0.000000e+00 : f32
    %11 = vector.broadcast %cst_6 : f32 to vector<1x2xf32>
    %12 = arith.maximumf %10, %11 : vector<1x2xf32>
    %c0_7 = arith.constant 0 : index
    %c0_8 = arith.constant 0 : index
    %13 = vector.load %arg3[%c0_7, %c0_8] : memref<32x2xf32, #tpu.memory_space<vmem>>, vector<32x2xf32>
    %14 = vector.broadcast %12 : vector<1x2xf32> to vector<32x2xf32>
    %15 = arith.mulf %13, %14 : vector<32x2xf32>
    %cst_9 = arith.constant dense<0.000000e+00> : vector<32xf32>
    %16 = vector.multi_reduction <add>, %15, %cst_9 [1] : vector<32x2xf32> to vector<32xf32>
    %17 = vector.shape_cast %16 : vector<32xf32> to vector<32x1xf32>
    %18 = arith.negf %17 : vector<32x1xf32>
    %19 = math.exp %18 : vector<32x1xf32>
    %cst_10 = arith.constant 1.000000e+00 : f32
    %20 = vector.broadcast %cst_10 : f32 to vector<32x1xf32>
    %21 = arith.addf %20, %19 : vector<32x1xf32>
    %22 = arith.divf %20, %21 : vector<32x1xf32>
    %23 = vector.broadcast %22 : vector<32x1xf32> to vector<32x256xf32>
    %24 = arith.mulf %1, %23 : vector<32x256xf32>
    %c0_11 = arith.constant 0 : index
    %c0_12 = arith.constant 0 : index
    %c0_13 = arith.constant 0 : index
    %25 = vector.load %arg4[%c0_11, %c0_12, %c0_13] : memref<1x32x256xf32, #tpu.memory_space<vmem>>, vector<1x32x256xf32>
    %26 = vector.shape_cast %25 : vector<1x32x256xf32> to vector<32x256xf32>
    %27 = vector.shape_cast %24 : vector<32x256xf32> to vector<1x32x256xf32>
    tpu.vector_store %arg4[%c0_11, %c0_12, %c0_13], %27 {strides = array<i32>} : memref<1x32x256xf32, #tpu.memory_space<vmem>>, vector<1x32x256xf32>,
    return
  }
  func.func @transform_0(%arg0: i32) -> (i32, i32, i32) {
    %c0_i32 = arith.constant 0 : i32
    %c0_i32_0 = arith.constant 0 : i32
    %c0_i32_1 = arith.constant 0 : i32
    return %arg0, %c0_i32, %c0_i32_0 : i32, i32, i32
  }
  func.func @transform_1(%arg0: i32) -> (i32, i32) {
    %c0_i32 = arith.constant 0 : i32
    %c0_i32_0 = arith.constant 0 : i32
    %c0_i32_1 = arith.constant 0 : i32
    return %c0_i32, %c0_i32_0 : i32, i32
  }
  func.func @transform_2(%arg0: i32) -> (i32, i32) {
    %c0_i32 = arith.constant 0 : i32
    %c0_i32_0 = arith.constant 0 : i32
    %c0_i32_1 = arith.constant 0 : i32
    return %c0_i32, %c0_i32_0 : i32, i32
  }
  func.func @transform_3(%arg0: i32) -> (i32, i32, i32) {
    %c0_i32 = arith.constant 0 : i32
    %c0_i32_0 = arith.constant 0 : i32
    %c0_i32_1 = arith.constant 0 : i32
    return %arg0, %c0_i32, %c0_i32_0 : i32, i32, i32
  }
}

</mosaic_0001>

<llo_original>
// kernel: tpu_custom_call.1
$region0: #{tpu_custom_call.1}
  #allocation0 [shape = 'u32[]', space=smem, size = 0x4, offset = 0x4, fixed_abs, tag = 'smem constant byte address 0x4 - core index']
  #allocation1 [shape = 'u32[144,128]{1,0:T(1,128)}', space=vmem, size = 0x12000, scoped, tag = 'internal scratch']
  %s0 = inlined_call_operand.hbm [shape: f32[2,32,256], index: 0, kind: input, shape index: {}]
  %s1 = inlined_call_operand.vmem [shape: f32[32,2], index: 1, kind: input, shape index: {}]
  %s2 = inlined_call_operand.vmem [shape: f32[32,2], index: 2, kind: input, shape index: {}]
  %s3 = inlined_call_operand.hbm [shape: f32[2,32,256], index: 3, kind: output, shape index: {}]
  %s4 = sld [smem:[#allocation0]]
  $region49: #{tpu_custom_call.1} parent=0
    _
  %s6 = ssub.s32 1, %s4
  %s7 = scalar_select 0, %s6, %s4
  $region1: #{tpu_custom_call.1} parent=0
    #allocation2 [shape = 'u8[65536]{0}', space=vmem, size = 0x10000, scoped, tag = 'input window, operand 0']
    #allocation3 [shape = 's32[2]{0}', space=sflag, size = 0x8, scoped, tag = 'scoped memory for tpu_custom_call.1']
    #allocation4 [shape = 's32[2]{0}', space=sflag, size = 0x8, scoped, tag = 'scoped memory for tpu_custom_call.1']
    #allocation5 [shape = 'u8[65536]{0}', space=vmem, size = 0x10000, scoped, tag = 'output window, operand 0']
    %8 = vsyncpa [#allocation3], 0
    %s9 = scalar_lea.sflag [#allocation3], 1
    %10 = vsyncpa %s9, 0
    %11 = vsyncpa [#allocation4], 0
    %s12 = scalar_lea.sflag [#allocation4], 1
    %13 = vsyncpa %s12, 0
    loop: start=0, step=1, limit=4
    $region2: #{tpu_custom_call.1} parent=1 // loop_pre_header
      _
    $region3: #{tpu_custom_call.1} parent=1 // loop_header
      %s15 = sphi 0, %s19
      %p16 = scmp.ge.s32.totalorder %s15, 4
      %s25 = sphi 0, %s27
      %s28 = sphi 0, %s25
      %s29 = sphi 0, %s28
      %s45 = sphi 0, %s29
      %s49 = sphi 0, %s49
      %s51 = sphi 0, %s49
      %s52 = sphi 0, %s51
      %s66 = sphi 0, %s52
      %s70 = sphi 0, %s70
      %s72 = sphi 0, %s70
      %s73 = sphi 0, %s72
      %s87 = sphi 0, %s73
      %s93 = sphi 0, %s95
      %s96 = sphi 0, %s93
      %s97 = sphi 0, %s96
      %s113 = sphi 0, %s97
    $region4: #{tpu_custom_call.1} parent=1 // loop_header_branch
      %18 = sbr.rel (%p16) target = $region8
    $region5: #{tpu_custom_call.1} parent=1 // loop_body
      %s20 = ssub.s32 %s15, 1
      %s21 = ssub.s32 %s15, 2
      %s22 = sadd.s32 %s15, 1
      %s23 = ssub.s32 %s15, %s22
      %p24 = scmp.eq.s32.totalorder %s23, 0
      %s26 = sadd.s32 %s25, 1
      %s27 = scalar_select %p24, %s25, %s26
      %p30 = pneg %p24
      %p31 = scmp.eq.s32.totalorder %s15, 1
      %p32 = por %p30, %p31
      %p33 = scmp.ne.s32.totalorder %s25, %s28
      %p34 = scmp.eq.s32.totalorder %s15, 0
      %p35 = por %p33, %p34
      %p36 = scmp.ne.s32.totalorder %s25, %s28
      %p37 = scmp.eq.s32.totalorder %s20, 1
      %p38 = por %p36, %p37
      %p39 = scmp.ne.s32.totalorder %s28, %s29
      %p40 = scmp.eq.s32.totalorder %s20, 0
      %p41 = por %p39, %p40
      %p42 = scmp.ne.s32.totalorder %s28, %s29
      %p43 = scmp.eq.s32.totalorder %s21, 1
      %p44 = por %p42, %p43
      %p46 = scmp.ne.s32.totalorder %s29, %s45
      %p47 = scmp.eq.s32.totalorder %s21, 0
      %p48 = por %p46, %p47
      %s50 = sadd.s32 %s49, 1
      %p53 = scmp.eq.s32.totalorder %s15, 1
      %p54 = scmp.ne.s32.totalorder %s49, %s51
      %p55 = scmp.eq.s32.totalorder %s15, 0
      %p56 = por %p54, %p55
      %p57 = scmp.ne.s32.totalorder %s49, %s51
      %p58 = scmp.eq.s32.totalorder %s20, 1
      %p59 = por %p57, %p58
      %p60 = scmp.ne.s32.totalorder %s51, %s52
      %p61 = scmp.eq.s32.totalorder %s20, 0
      %p62 = por %p60, %p61
      %p63 = scmp.ne.s32.totalorder %s51, %s52
      %p64 = scmp.eq.s32.totalorder %s21, 1
      %p65 = por %p63, %p64
      %p67 = scmp.ne.s32.totalorder %s52, %s66
      %p68 = scmp.eq.s32.totalorder %s21, 0
      %p69 = por %p67, %p68
      %s71 = sadd.s32 %s70, 1
      %p74 = scmp.eq.s32.totalorder %s15, 1
      %p75 = scmp.ne.s32.totalorder %s70, %s72
      %p76 = scmp.eq.s32.totalorder %s15, 0
      %p77 = por %p75, %p76
      %p78 = scmp.ne.s32.totalorder %s70, %s72
      %p79 = scmp.eq.s32.totalorder %s20, 1
      %p80 = por %p78, %p79
      %p81 = scmp.ne.s32.totalorder %s72, %s73
      %p82 = scmp.eq.s32.totalorder %s20, 0
      %p83 = por %p81, %p82
      %p84 = scmp.ne.s32.totalorder %s72, %s73
      %p85 = scmp.eq.s32.totalorder %s21, 1
      %p86 = por %p84, %p85
      %p88 = scmp.ne.s32.totalorder %s73, %s87
      %p89 = scmp.eq.s32.totalorder %s21, 0
      %p90 = por %p88, %p89
      %s91 = ssub.s32 %s15, %s22
      %p92 = scmp.eq.s32.totalorder %s91, 0
      %s94 = sadd.s32 %s93, 1
      %s95 = scalar_select %p92, %s93, %s94
      %p98 = pneg %p92
      %p99 = scmp.eq.s32.totalorder %s15, 1
      %p100 = por %p98, %p99
      %p101 = scmp.ne.s32.totalorder %s93, %s96
      %p102 = scmp.eq.s32.totalorder %s15, 0
      %p103 = por %p101, %p102
      %p104 = scmp.ne.s32.totalorder %s93, %s96
      %p105 = scmp.eq.s32.totalorder %s20, 1
      %p106 = por %p104, %p105
      %p107 = scmp.ne.s32.totalorder %s96, %s97
      %p108 = scmp.eq.s32.totalorder %s20, 0
      %p109 = por %p107, %p108
      %p110 = scmp.ne.s32.totalorder %s96, %s97
      %p111 = scmp.eq.s32.totalorder %s21, 1
      %p112 = por %p110, %p111
      %p114 = scmp.ne.s32.totalorder %s97, %s113
      %p115 = scmp.eq.s32.totalorder %s21, 0
      %p116 = por %p114, %p115
      %p117 = scmp.le.s32.totalorder 1, %s15
      %p118 = scmp.lt.s32.totalorder %s15, 3
      %p119 = pnand %p117, %p118
      %p120 = pneg %p119
      // Predicated region
      $region9: #{tpu_custom_call.1} parent=5 // pred_check
        _
      $region10: #{tpu_custom_call.1} parent=5 // pred_check_branch
        %122 = sbr.rel (%p119) target = $region12
      $region11: #{tpu_custom_call.1} parent=5 // pred_region
        %s123 = ssub.s32 %s15, 1
        // Predicated region
        $region13: #{tpu_custom_call.1} parent=11 // pred_check
          %p124 = pneg %p62
        $region14: #{tpu_custom_call.1} parent=11 // pred_check_branch
          %126 = sbr.rel (%p124) target = $region16
        $region15: #{tpu_custom_call.1} parent=11 // pred_region
          _
        $region16: #{tpu_custom_call.1} parent=11 // pred_fallthru
          _
        // Predicated region
        $region17: #{tpu_custom_call.1} parent=11 // pred_check
          %p127 = pneg %p83
        $region18: #{tpu_custom_call.1} parent=11 // pred_check_branch
          %129 = sbr.rel (%p127) target = $region20
        $region19: #{tpu_custom_call.1} parent=11 // pred_region
          _
        $region20: #{tpu_custom_call.1} parent=11 // pred_fallthru
          _
      $region12: #{tpu_custom_call.1} parent=5 // pred_fallthru
        _
      %p130 = scmp.lt.s32.totalorder %s15, 2
      // Predicated region
      $region21: #{tpu_custom_call.1} parent=5 // pred_check
        %p131 = pneg %p130
      $region22: #{tpu_custom_call.1} parent=5 // pred_check_branch
        %133 = sbr.rel (%p131) target = $region24
      $region23: #{tpu_custom_call.1} parent=5 // pred_region
        // Predicated region
        $region25: #{tpu_custom_call.1} parent=23 // pred_check
          %p134 = pneg %p35
        $region26: #{tpu_custom_call.1} parent=23 // pred_check_branch
          %136 = sbr.rel (%p134) target = $region28
        $region27: #{tpu_custom_call.1} parent=23 // pred_region
          %s137 = sand.u32 %s25, 1
          %s138 = scalar_lea.sflag [#allocation3], %s137
          %s139 = sand.u32 %s25, 1
          %s140 = smul.addr %s139, 64
          %s141 = scalar_lea.vmem [#allocation2], %s140
          %s143 = ssub.s32 1024, 1024
          %144 = vsyncadd %s138, %s143
          %s145 = smul.addr %s15, 8
          %s146 = smul.addr %s145, 128
          %s147 = scalar_lea.hbm %s0, %s146
          %s148 = sshll.u32 %s141, 4
          %s149 = int_to_ptr.vmem [resolvable:$true] %s148
          %154 = dma.hbm_to_vmem [thread:$0]  %s147, 1024, %s149, %s138, 256, 256, 16
        $region28: #{tpu_custom_call.1} parent=23 // pred_fallthru
          _
      $region24: #{tpu_custom_call.1} parent=5 // pred_fallthru
        _
      %p155 = scmp.le.s32.totalorder 1, %s15
      %p156 = scmp.lt.s32.totalorder %s15, 3
      %p157 = pnand %p155, %p156
      %p158 = pneg %p157
      // Predicated region
      $region29: #{tpu_custom_call.1} parent=5 // pred_check
        _
      $region30: #{tpu_custom_call.1} parent=5 // pred_check_branch
        %160 = sbr.rel (%p157) target = $region32
      $region31: #{tpu_custom_call.1} parent=5 // pred_region
        %s161 = ssub.s32 %s15, 1
        %s162 = sand.u32 %s28, 1
        %s163 = scalar_lea.sflag [#allocation3], %s162
        %s164 = sand.u32 %s28, 1
        %s165 = smul.addr %s164, 64
        %s166 = scalar_lea.vmem [#allocation2], %s165
        // Predicated region
        $region33: #{tpu_custom_call.1} parent=31 // pred_check
          %p167 = pneg %p41
        $region34: #{tpu_custom_call.1} parent=31 // pred_check_branch
          %169 = sbr.rel (%p167) target = $region36
        $region35: #{tpu_custom_call.1} parent=31 // pred_region
          %170 = dma.done %s163, 1024
        $region36: #{tpu_custom_call.1} parent=31 // pred_fallthru
          _
        %s171 = sand.u32 %s28, 1
        %s172 = scalar_lea.sflag [#allocation3], %s171
        %s173 = sand.u32 %s28, 1
        %s174 = smul.addr %s173, 64
        %s175 = scalar_lea.vmem [#allocation2], %s174
        %p176 = pneg %p41
        %p177 = pneg %p38
        %p178 = pneg %p62
        %p179 = pneg %p59
        %p180 = pneg %p83
        %p181 = pneg %p80
        %p182 = pneg %p109
        %p183 = pneg %p106
        %s184 = sand.u32 %s96, 1
        %s185 = scalar_lea.sflag [#allocation4], %s184
        %s186 = sand.u32 %s96, 1
        %s187 = smul.addr %s186, 64
        %s188 = scalar_lea.vmem [#allocation5], %s187
        %v189 = vld [vmem:[%s166] sm:$0xff]
        %v190 = vld [vmem:[%s166 + $0x8] sm:$0xff]
        %v191 = vld [vmem:[%s166 + $0x10] sm:$0xff]
        %v192 = vld [vmem:[%s166 + $0x18] sm:$0xff]
        %v193 = vld [vmem:[%s166 + $0x20] sm:$0xff]
        %v194 = vld [vmem:[%s166 + $0x28] sm:$0xff]
        %v195 = vld [vmem:[%s166 + $0x30] sm:$0xff]
        %v196 = vld [vmem:[%s166 + $0x38] sm:$0xff]
        %v197 = vadd.f32 %v189, %v190
        %198 = vadd.xlane.f32.xlu0 %v197
        %v199 = vpop.xlane.xlu0 %198
        %v200 = vadd.f32 %v191, %v192
        %201 = vadd.xlane.f32.xlu0 %v200
        %v202 = vpop.xlane.xlu0 %201
        %v203 = vadd.f32 %v193, %v194
        %204 = vadd.xlane.f32.xlu0 %v203
        %v205 = vpop.xlane.xlu0 %204
        %v206 = vadd.f32 %v195, %v196
        %207 = vadd.xlane.f32.xlu0 %v206
        %v208 = vpop.xlane.xlu0 %207
        %v209 = vrcp.pop 256.0
        %v210 = vmul.f32 %v199, %v209
        %v211 = vmul.f32 %v202, %v209
        %v212 = vmul.f32 %v205, %v209
        %v213 = vmul.f32 %v208, %v209
        %v214 = vld [vmem:[%s1] sm:$0xff]
        %v215 = vld [vmem:[%s1 + $0x8] sm:$0xff]
        %v216 = vld [vmem:[%s1 + $0x10] sm:$0xff]
        %v217 = vld [vmem:[%s1 + $0x18] sm:$0xff]
        %v218 = vmul.f32 %v214, %v210
        %v219 = vmul.f32 %v215, %v211
        %v220 = vmul.f32 %v216, %v212
        %v221 = vmul.f32 %v217, %v213
        %vm222 = vcmask 15360
        %v223 = vsel %vm222, %v218, 0.0
        %v224 = vsel %vm222, %v219, 0.0
        %v225 = vadd.f32 %v223, %v224
        %v226 = vsel %vm222, %v220, 0.0
        %v227 = vadd.f32 %v225, %v226
        %v228 = vsel %vm222, %v221, 0.0
        %v229 = vadd.f32 %v227, %v228
        %v230 = vrot.slane %v229, 4
        %v231 = vadd.f32 %v229, %v230
        %v232 = vrot.slane %v231, 2
        %v233 = vadd.f32 %v231, %v232
        %v234 = vrot.slane %v233, 1
        %v235 = vadd.f32 %v233, %v234
        %v236 = vmax.f32 %v235, 0.0
        %v237 = vld [vmem:[%s2] sm:$0xff]
        %v238 = vld [vmem:[%s2 + $0x8] sm:$0xff]
        %v239 = vld [vmem:[%s2 + $0x10] sm:$0xff]
        %v240 = vld [vmem:[%s2 + $0x18] sm:$0xff]
        %v241 = vmul.f32 %v237, %v236
        %v242 = vmul.f32 %v238, %v236
        %v243 = vmul.f32 %v239, %v236
        %v244 = vmul.f32 %v240, %v236
        %v245 = vsel %vm222, %v241, 0.0
        %246 = vadd.xlane.f32.xlu0 %v245
        %v247 = vpop.xlane.xlu0 %246
        %v248 = vsel %vm222, %v242, 0.0
        %249 = vadd.xlane.f32.xlu0 %v248
        %v250 = vpop.xlane.xlu0 %249
        %v251 = vsel %vm222, %v243, 0.0
        %252 = vadd.xlane.f32.xlu0 %v251
        %v253 = vpop.xlane.xlu0 %252
        %v254 = vsel %vm222, %v244, 0.0
        %255 = vadd.xlane.f32.xlu0 %v254
        %v256 = vpop.xlane.xlu0 %255
        %v257 = vxor.u32 %v247, 2147483648
        %v258 = vxor.u32 %v250, 2147483648
        %v259 = vxor.u32 %v253, 2147483648
        %v260 = vxor.u32 %v256, 2147483648
        %v261 = vmul.f32 %v257, 1.442695
        %v262 = vpow.pop %v261
        %v263 = vmul.f32 %v258, 1.442695
        %v264 = vpow.pop %v263
        %v265 = vmul.f32 %v259, 1.442695
        %v266 = vpow.pop %v265
        %v267 = vmul.f32 %v260, 1.442695
        %v268 = vpow.pop %v267
        %v269 = vadd.f32 %v262, 1.0
        %v270 = vadd.f32 %v264, 1.0
        %v271 = vadd.f32 %v266, 1.0
        %v272 = vadd.f32 %v268, 1.0
        %v273 = vrcp.pop %v269
        %v274 = vmul.f32 1.0, %v273
        %v275 = vrcp.pop %v270
        %v276 = vmul.f32 1.0, %v275
        %v277 = vrcp.pop %v271
        %v278 = vmul.f32 1.0, %v277
        %v279 = vrcp.pop %v272
        %v280 = vmul.f32 1.0, %v279
        %v281 = vmul.f32 %v189, %v274
        %v282 = vmul.f32 %v190, %v274
        %v283 = vmul.f32 %v191, %v276
        %v284 = vmul.f32 %v192, %v276
        %v285 = vmul.f32 %v193, %v278
        %v286 = vmul.f32 %v194, %v278
        %v287 = vmul.f32 %v195, %v280
        %v288 = vmul.f32 %v196, %v280
        %289 = vst [vmem:[%s188] sm:$0xff] %v281
        %290 = vst [vmem:[%s188 + $0x8] sm:$0xff] %v282
        %291 = vst [vmem:[%s188 + $0x10] sm:$0xff] %v283
        %292 = vst [vmem:[%s188 + $0x18] sm:$0xff] %v284
        %293 = vst [vmem:[%s188 + $0x20] sm:$0xff] %v285
        %294 = vst [vmem:[%s188 + $0x28] sm:$0xff] %v286
        %295 = vst [vmem:[%s188 + $0x30] sm:$0xff] %v287
        %296 = vst [vmem:[%s188 + $0x38] sm:$0xff] %v288
        %s297 = sand.u32 %s96, 1
        %s298 = scalar_lea.sflag [#allocation4], %s297
        %s299 = sand.u32 %s96, 1
        %s300 = smul.addr %s299, 64
        %s301 = scalar_lea.vmem [#allocation5], %s300
        // Predicated region
        $region37: #{tpu_custom_call.1} parent=31 // pred_check
          %p302 = pneg %p106
        $region38: #{tpu_custom_call.1} parent=31 // pred_check_branch
          %304 = sbr.rel (%p302) target = $region40
        $region39: #{tpu_custom_call.1} parent=31 // pred_region
          %s306 = ssub.s32 1024, 1024
          %307 = vsyncadd %s298, %s306
          %s308 = smul.addr %s20, 8
          %s309 = smul.addr %s308, 128
          %s310 = scalar_lea.hbm %s3, %s309
          %s311 = sshll.u32 %s301, 4
          %s312 = int_to_ptr.vmem [resolvable:$true] %s311
          %317 = dma.vmem_to_hbm [thread:$0]  %s312, 1024, %s310, %s298, 256, 256, 16
        $region40: #{tpu_custom_call.1} parent=31 // pred_fallthru
          _
      $region32: #{tpu_custom_call.1} parent=5 // pred_fallthru
        _
      %p318 = scmp.le.s32.totalorder 2, %s15
      // Predicated region
      $region41: #{tpu_custom_call.1} parent=5 // pred_check
        %p319 = pneg %p318
      $region42: #{tpu_custom_call.1} parent=5 // pred_check_branch
        %321 = sbr.rel (%p319) target = $region44
      $region43: #{tpu_custom_call.1} parent=5 // pred_region
        %s322 = ssub.s32 %s15, 2
        // Predicated region
        $region45: #{tpu_custom_call.1} parent=43 // pred_check
          %p323 = pneg %p112
        $region46: #{tpu_custom_call.1} parent=43 // pred_check_branch
          %325 = sbr.rel (%p323) target = $region48
        $region47: #{tpu_custom_call.1} parent=43 // pred_region
          %s326 = sand.u32 %s97, 1
          %s327 = scalar_lea.sflag [#allocation4], %s326
          %s328 = sand.u32 %s97, 1
          %s329 = smul.addr %s328, 64
          %s330 = scalar_lea.vmem [#allocation5], %s329
          %331 = dma.done %s327, 1024
        $region48: #{tpu_custom_call.1} parent=43 // pred_fallthru
          _
      $region44: #{tpu_custom_call.1} parent=5 // pred_fallthru
        _
    $region6: #{tpu_custom_call.1} parent=1 // loop_footer
      %s19 = sadd.s32 1, %s15
    $region7: #{tpu_custom_call.1} parent=1 // loop_footer_branch
      %14 = sbr.rel target = $region3
    $region8: #{tpu_custom_call.1} parent=1 // loop_exit
      _
    %332 = vsyncpa [#allocation3], 1
    %s333 = scalar_lea.sflag [#allocation3], 1
    %334 = vsyncpa %s333, 1
    %335 = vsyncpa [#allocation4], 1
    %s336 = scalar_lea.sflag [#allocation4], 1
    %337 = vsyncpa %s336, 1

</llo_original>
